<compile_context>
chip_gen: v5e
topology: v5e:2x2
jax: 0.10.0
libtpu: 0.0.40
codegen_flags: <defaults>
</compile_context>

<pallas_src>
import functools

import numpy as np
import jax
import jax.numpy as jnp
from jax.experimental import pallas as pl
from jax.experimental.pallas import tpu as pltpu

_LN_EPS = 1e-5
_NEG = -1e9          # finite "masked" logit (avoids any -inf arithmetic / NaN risk)


# ----------------------------------------------------------------------------- compiler params
def _vmem_limit_bytes():
    try:
        cap = int(pltpu.get_tpu_info().vmem_capacity_bytes)
    except Exception:
        cap = 64 * 1024 * 1024
    return min(32 * 1024 * 1024, cap // 2)


def _compiler_params():
    return pltpu.CompilerParams(
        dimension_semantics=("parallel",),
        vmem_limit_bytes=_vmem_limit_bytes(),
    )


# ----------------------------------------------------------------------------- in-kernel helpers
def _erf_poly(x):
    # Abramowitz & Stegun 7.1.26 erf polynomial (|err| < 1.5e-7): exact-GELU (nn.GELU default)
    # semantics that lower cleanly on Mosaic.
    a1, a2, a3, a4, a5 = 0.254829592, -0.284496736, 1.421413741, -1.453152027, 1.061405429
    p = 0.3275911
    ax = jnp.abs(x)
    t = 1.0 / (1.0 + p * ax)
    poly = ((((a5 * t + a4) * t + a3) * t + a2) * t + a1) * t
    y = 1.0 - poly * jnp.exp(-ax * ax)
    return jnp.where(x >= 0.0, y, -y)


def _gelu_exact(x):
    return 0.5 * x * (1.0 + _erf_poly(x * 0.7071067811865476))


def _layernorm_f32(x, gamma, beta):
    gamma = gamma.astype(jnp.float32)
    beta = beta.astype(jnp.float32)
    mean = jnp.mean(x, axis=-1, keepdims=True)
    xc = x - mean
    var = jnp.mean(xc * xc, axis=-1, keepdims=True)
    return xc * jax.lax.rsqrt(var + _LN_EPS) * gamma + beta


# ----------------------------------------------------------------------------- kernels
def _patch_linear_kernel(x_ref, w_ref, b_ref, o_ref, *, compute_dtype):
    # PatchMerging projection:  y = feats @ W + b   (one batch element per grid step)
    x = x_ref[0].astype(compute_dtype)                                # (N, fin)
    w = w_ref[...].astype(compute_dtype)                              # (fin, hidden)
    y = jnp.dot(x, w, preferred_element_type=jnp.float32)
    o_ref[0] = (y + b_ref[...].astype(jnp.float32)).astype(o_ref.dtype)


def _swin_block_kernel(x_ref, ln1g_ref, ln1b_ref, qkvw_ref, outw_ref, outb_ref,
                       bias_ref, ln2g_ref, ln2b_ref, w1_ref, b1_ref, w2_ref, b2_ref,
                       o_ref, *, heads, scale, compute_dtype):
    # Fully fused SwinBlock (regular or shifted — difference is only in the dense bias):
    #   t  = x + OutProj( WindowAttn( LN1(x) ) )
    #   o  = t + W2 @ gelu( W1 @ LN2(t) + b1 ) + b2
    f32 = jnp.float32
    cast = lambda a: a.astype(compute_dtype)

    def mm(a, b):
        return jnp.dot(cast(a), cast(b), preferred_element_type=f32)

    x = x_ref[0].astype(f32)                                          # (N, D)
    bias = bias_ref[...].astype(f32)                                  # (N, N) rel-pos + masks

    # ---- Residual(PreNorm(WindowAttention)) --------------------------------
    xn = _layernorm_f32(x, ln1g_ref[...], ln1b_ref[...])
    attn_out = outb_ref[...].astype(f32)                              # (1, D), broadcasts up
    for h in range(heads):
        q = mm(xn, qkvw_ref[3 * h + 0]) * scale                       # (N, dh)
        k = mm(xn, qkvw_ref[3 * h + 1])                               # (N, dh)
        v = mm(xn, qkvw_ref[3 * h + 2])                               # (N, dh)
        dots = jnp.einsum('nd,md->nm', cast(q), cast(k),
                          preferred_element_type=f32) + bias          # (N, N)
        m = jnp.max(dots, axis=-1, keepdims=True)
        p = jnp.exp(dots - m)
        s = jnp.sum(p, axis=-1, keepdims=True)
        if compute_dtype == jnp.bfloat16:
            p = p * pl.reciprocal(s, approx=True)                     # EUP divide
        else:
            p = p / s                                                 # exact for the f32 check
        attn_out = attn_out + mm(mm(p, v), outw_ref[h])               # (N, D)
    t = x + attn_out

    # ---- Residual(PreNorm(FeedForward)) ------------------------------------
    tn = _layernorm_f32(t, ln2g_ref[...], ln2b_ref[...])
    hmid = _gelu_exact(mm(tn, w1_ref[...]) + b1_ref[...].astype(f32))
    y = mm(hmid, w2_ref[...]) + b2_ref[...].astype(f32)
    o_ref[0] = (t + y).astype(o_ref.dtype)


# ----------------------------------------------------------------------------- pallas_call wrappers
def _patch_linear(feats, w, bvec, compute_dtype):
    b, n, fin = feats.shape
    hidden = w.shape[1]
    return pl.pallas_call(
        functools.partial(_patch_linear_kernel, compute_dtype=compute_dtype),
        out_shape=jax.ShapeDtypeStruct((b, n, hidden), feats.dtype),
        grid_spec=pltpu.PrefetchScalarGridSpec(
            num_scalar_prefetch=0,
            grid=(b,),
            in_specs=[
                pl.BlockSpec((1, n, fin), lambda i: (i, 0, 0)),
                pl.BlockSpec((fin, hidden), lambda i: (0, 0)),
                pl.BlockSpec((1, hidden), lambda i: (0, 0)),
            ],
            out_specs=pl.BlockSpec((1, n, hidden), lambda i: (i, 0, 0)),
        ),
        compiler_params=_compiler_params(),
    )(feats, w, bvec.reshape(1, hidden))


def _swin_block(t, p, cfg, compute_dtype):
    b, n, d = t.shape
    heads, dh = cfg["heads"], cfg["head_dim"]
    mlp_dim = p["ffn_w1"].shape[1]
    kernel = functools.partial(_swin_block_kernel, heads=heads,
                               scale=dh ** (-0.5), compute_dtype=compute_dtype)
    c2 = lambda i: (0, 0)
    c3 = lambda i: (0, 0, 0)
    return pl.pallas_call(
        kernel,
        out_shape=jax.ShapeDtypeStruct((b, n, d), t.dtype),
        grid_spec=pltpu.PrefetchScalarGridSpec(
            num_scalar_prefetch=0,
            grid=(b,),
            in_specs=[
                pl.BlockSpec((1, n, d), lambda i: (i, 0, 0)),               # x
                pl.BlockSpec((1, d), c2), pl.BlockSpec((1, d), c2),         # ln1 gamma/beta
                pl.BlockSpec((3 * heads, d, dh), c3),                       # per-head Wq/Wk/Wv
                pl.BlockSpec((heads, dh, d), c3),                           # per-head W_out
                pl.BlockSpec((1, d), c2),                                   # out bias
                pl.BlockSpec((n, n), c2),                                   # dense attn bias
                pl.BlockSpec((1, d), c2), pl.BlockSpec((1, d), c2),         # ln2 gamma/beta
                pl.BlockSpec((d, mlp_dim), c2), pl.BlockSpec((1, mlp_dim), c2),
                pl.BlockSpec((mlp_dim, d), c2), pl.BlockSpec((1, d), c2),
            ],
            out_specs=pl.BlockSpec((1, n, d), lambda i: (i, 0, 0)),
        ),
        compiler_params=_compiler_params(),
    )(t,
      p["ln1_g"].reshape(1, d), p["ln1_b"].reshape(1, d),
      p["qkv_w_heads"], p["out_w_heads"], p["out_b"].reshape(1, d),
      p["attn_bias"],
      p["ln2_g"].reshape(1, d), p["ln2_b"].reshape(1, d),
      p["ffn_w1"], p["ffn_b1"].reshape(1, mlp_dim),
      p["ffn_w2"], p["ffn_b2"].reshape(1, d))


# ----------------------------------------------------------------------------- layout plumbing (XLA)
def _unfold_patches(x, df):
    # torch.nn.Unfold(kernel=df, stride=df) + view + permute; feature order (c, ki, kj).
    b, c, h, w = x.shape
    nh, nw = h // df, w // df
    x = x.reshape(b, c, nh, df, nw, df)
    x = x.transpose(0, 2, 4, 1, 3, 5)
    return x.reshape(b, nh, nw, c * df * df)


def swin_module_forward(x, params, cfg, use_bf16=True):
    compute_dtype = jnp.bfloat16 if use_bf16 else jnp.float32
    df, hidden = cfg["downscaling_factor"], cfg["hidden"]
    feats = _unfold_patches(x, df)                                     # (B, Hg, Wg, C*df*df)
    b, hg, wg, fin = feats.shape
    n = hg * wg
    t = _patch_linear(feats.reshape(b, n, fin), params["patch_w"], params["patch_b"],
                      compute_dtype)                                   # (B, N, hidden)
    for blk in params["blocks"]:
        t = _swin_block(t, blk["regular"], cfg, compute_dtype)
        t = _swin_block(t, blk["shifted"], cfg, compute_dtype)
    return t.reshape(b, hg, wg, hidden).transpose(0, 3, 1, 2)


# ----------------------------------------------------------------------------- bias / param setup
def _relative_indices(ws):
    coords = np.array([[x, y] for x in range(ws) for y in range(ws)])
    return coords[None, :, :] - coords[:, None, :] + ws - 1            # (S, S, 2)


def _shift_masks(ws, neg):
    disp = ws // 2
    s = ws * ws
    ul = np.zeros((s, s), np.float32)
    ul[-disp * ws:, :-disp * ws] = neg
    ul[:-disp * ws, -disp * ws:] = neg
    lr = np.zeros((ws, ws, ws, ws), np.float32)
    lr[:, -disp:, :, :-disp] = neg
    lr[:, :-disp, :, -disp:] = neg
    return ul, lr.reshape(s, s)


def _dense_attn_bias(pos_embedding, hg, wg, ws, shifted):
    """Dense (N, N) additive bias over row-major tokens: relative-position embedding inside the
    (possibly cyclically-shifted) window, torch's upper/lower + left/right shift masks, and
    _NEG for cross-window pairs.  Folding the shift into the bias makes the shifted block
    identical to the regular one inside the kernel (no rolls / window rearranges)."""
    n = hg * wg
    disp = ws // 2 if shifted else 0
    r, c = np.divmod(np.arange(n), wg)
    rs, cs = (r - disp) % hg, (c - disp) % wg                          # position after CyclicShift(-disp)
    wrow, wcol = rs // ws, cs // ws
    wid = wrow * (wg // ws) + wcol
    p = (rs % ws) * ws + (cs % ws)                                     # within-window index
    same = wid[:, None] == wid[None, :]

    idx = _relative_indices(ws)
    rel = pos_embedding[idx[..., 0], idx[..., 1]]                      # (S, S)
    bias = rel[p[:, None], p[None, :]]                                 # (N, N)

    add = np.zeros((n, n), np.float32)
    if shifted:
        ul, lr = _shift_masks(ws, _NEG)
        last_row = wrow == hg // ws - 1
        last_col = wcol == wg // ws - 1
        pr = same & last_row[:, None] & last_row[None, :]
        pc = same & last_col[:, None] & last_col[None, :]
        add = add + np.where(pr, ul[p[:, None], p[None, :]], 0.0)
        add = add + np.where(pc, lr[p[:, None], p[None, :]], 0.0)
    add = np.where(same, add, _NEG)
    return (bias + jnp.asarray(add)).astype(jnp.float32)


def _stack_qkv_heads(qkv_w, heads, dh):
    # (D, 3*inner) -> (3*heads, D, dh) so the kernel only does leading-axis indexing.
    inner = qkv_w.shape[1] // 3
    parts = []
    for h in range(heads):
        for part in range(3):                                          # 0=q, 1=k, 2=v
            parts.append(qkv_w[:, part * inner + h * dh: part * inner + (h + 1) * dh])
    return jnp.stack(parts, axis=0)


def _stack_out_heads(out_w, heads, dh):
    # (inner, D) -> (heads, dh, D)
    return jnp.stack([out_w[h * dh:(h + 1) * dh, :] for h in range(heads)], axis=0)


def init_params(key, cfg, grid_hw):
    c, hidden = cfg["in_channels"], cfg["hidden"]
    df, ws = cfg["downscaling_factor"], cfg["window_size"]
    heads, dh = cfg["heads"], cfg["head_dim"]
    inner, mlp_dim, fin = heads * dh, hidden * 4, c * df * df
    hg, wg = grid_hw
    n_pairs = cfg["layers"] // 2

    keys = iter(jax.random.split(key, 4 + 32 * n_pairs))

    def normal(shape, scale=0.1):
        return scale * jax.random.normal(next(keys), shape, jnp.float32)

    params = {"patch_w": normal((fin, hidden)), "patch_b": normal((hidden,)), "blocks": []}

    def make_block(shifted):
        p = {
            "ln1_g": 1.0 + normal((hidden,)), "ln1_b": normal((hidden,)),
            "qkv_w": normal((hidden, 3 * inner)),                       # no bias (matches torch)
            "out_w": normal((inner, hidden)), "out_b": normal((hidden,)),
            "pos_embedding": jax.random.normal(next(keys), (2 * ws - 1, 2 * ws - 1), jnp.float32),
            "ln2_g": 1.0 + normal((hidden,)), "ln2_b": normal((hidden,)),
            "ffn_w1": normal((hidden, mlp_dim)), "ffn_b1": normal((mlp_dim,)),
            "ffn_w2": normal((mlp_dim, hidden)), "ffn_b2": normal((hidden,)),
        }
        p["qkv_w_heads"] = _stack_qkv_heads(p["qkv_w"], heads, dh)
        p["out_w_heads"] = _stack_out_heads(p["out_w"], heads, dh)
        p["attn_bias"] = _dense_attn_bias(p["pos_embedding"], hg, wg, ws, shifted)
        return p

    for _ in range(n_pairs):
        params["blocks"].append({"regular": make_block(False), "shifted": make_block(True)})
    return params


# ----------------------------------------------------------------------------- torch-faithful reference
def _reference_forward(x, params, cfg):
    # Pure-JAX/f32 reference that mirrors the PyTorch SwinModule forward structurally
    # (rolls, window rearranges, rel-pos gather, -inf shift masks) from the RAW parameters,
    # so the kernel's dense-bias construction is validated independently.
    df, ws = cfg["downscaling_factor"], cfg["window_size"]
    heads, dh = cfg["heads"], cfg["head_dim"]
    inner = heads * dh
    scale = dh ** (-0.5)
    rel_idx = _relative_indices(ws)
    ul_inf, lr_inf = _shift_masks(ws, -np.inf)

    def layer_norm(t, g, b):
        mu = jnp.mean(t, axis=-1, keepdims=True)
        var = jnp.mean((t - mu) ** 2, axis=-1, keepdims=True)
        return (t - mu) / jnp.sqrt(var + _LN_EPS) * g + b

    def attention(t, p, shifted):
        b, H, W, _ = t.shape
        nwh, nww = H // ws, W // ws
        disp = ws // 2
        if shifted:
            t = jnp.roll(t, (-disp, -disp), (1, 2))
        q, k, v = jnp.split(t @ p["qkv_w"], 3, axis=-1)

        def to_win(z):
            z = z.reshape(b, nwh, ws, nww, ws, heads, dh)
            return z.transpose(0, 5, 1, 3, 2, 4, 6).reshape(b, heads, nwh * nww, ws * ws, dh)

        q, k, v = map(to_win, (q, k, v))
        dots = jnp.einsum('bhwid,bhwjd->bhwij', q, k) * scale
        dots = dots + p["pos_embedding"][rel_idx[..., 0], rel_idx[..., 1]]
        if shifted:
            win_mask = np.zeros((nwh * nww, ws * ws, ws * ws), np.float32)
            win_mask[-nww:] += ul_inf
            win_mask[nww - 1::nww] += lr_inf
            dots = dots + jnp.asarray(win_mask)
        attn = jax.nn.softmax(dots, axis=-1)
        out = jnp.einsum('bhwij,bhwjd->bhwid', attn, v)
        out = out.reshape(b, heads, nwh, nww, ws, ws, dh)
        out = out.transpose(0, 2, 4, 3, 5, 1, 6).reshape(b, H, W, inner)
        out = out @ p["out_w"] + p["out_b"]
        if shifted:
            out = jnp.roll(out, (disp, disp), (1, 2))
        return out

    def ffn(t, p):
        h = jax.nn.gelu(t @ p["ffn_w1"] + p["ffn_b1"], approximate=False)
        return h @ p["ffn_w2"] + p["ffn_b2"]

    t = _unfold_patches(x, df) @ params["patch_w"] + params["patch_b"]
    for blk in params["blocks"]:
        for name, shifted in (("regular", False), ("shifted", True)):
            p = blk[name]
            t = t + attention(layer_norm(t, p["ln1_g"], p["ln1_b"]), p, shifted)
            t = t + ffn(layer_norm(t, p["ln2_g"], p["ln2_b"]), p)
    return t.transpose(0, 3, 1, 2)


# ----------------------------------------------------------------------------- main
if __name__ == "__main__":
    cfg = dict(in_channels=3, hidden=32, layers=2, downscaling_factor=2,
               heads=2, head_dim=16, window_size=4)
    B, H, W = 2, 16, 16

    key = jax.random.PRNGKey(0)
    kp, kx = jax.random.split(key)
    hg, wg = H // cfg["downscaling_factor"], W // cfg["downscaling_factor"]
    params = init_params(kp, cfg, grid_hw=(hg, wg))
    x = jax.random.normal(kx, (B, cfg["in_channels"], H, W), jnp.float32)

    ref = jax.block_until_ready(_reference_forward(x, params, cfg))            # (2, 32, 8, 8)

    # Strict structural check: f32 kernel path vs torch-faithful windowed reference.
    out_f32 = jax.block_until_ready(swin_module_forward(x, params, cfg, use_bf16=False))
    np.testing.assert_allclose(np.asarray(out_f32), np.asarray(ref), rtol=2e-3, atol=2e-3)

    # Production path: bf16 MXU operands, f32 accumulation (looser tolerance for bf16 rounding).
    out_bf16 = jax.block_until_ready(swin_module_forward(x, params, cfg, use_bf16=True))
    np.testing.assert_allclose(np.asarray(out_bf16), np.asarray(ref), rtol=4e-2, atol=4e-2)

    print("KERNEL_OK")
</pallas_src>

<mosaic_0001>
module attributes {stable_mosaic.version = 11 : i64} {
  func.func @_patch_linear_kernel(%arg0: i32, %arg1: memref<1x64x12xf32, #tpu.memory_space<vmem>>, %arg2: memref<12x32xf32, #tpu.memory_space<vmem>>, %arg3: memref<1x32xf32, #tpu.memory_space<vmem>>, %arg4: memref<1x64x32xf32, #tpu.memory_space<vmem>>) attributes {dimension_semantics = [#tpu.dimension_semantics<parallel>], iteration_bounds = array<i64: 2>, scalar_prefetch = 0 : i64, scratch_operands = 0 : i64, tpu.core_type = #tpu.core_type<tc>, window_params = [{transform_indices = @transform_0, window_bounds = array<i64: 1, 64, 12>}, {pipeline_mode = #tpu.pipeline_mode<synchronous>, transform_indices = @transform_1, window_bounds = array<i64: 12, 32>}, {pipeline_mode = #tpu.pipeline_mode<synchronous>, transform_indices = @transform_2, window_bounds = array<i64: 1, 32>}, {transform_indices = @transform_3, window_bounds = array<i64: 1, 64, 32>}]} {
    %c0 = arith.constant 0 : index
    %c0_0 = arith.constant 0 : index
    %c0_1 = arith.constant 0 : index
    %0 = vector.load %arg1[%c0, %c0_0, %c0_1] : memref<1x64x12xf32, #tpu.memory_space<vmem>>, vector<1x64x12xf32>
    %1 = vector.shape_cast %0 : vector<1x64x12xf32> to vector<64x12xf32>
    %c0_2 = arith.constant 0 : index
    %c0_3 = arith.constant 0 : index
    %2 = vector.load %arg2[%c0_2, %c0_3] : memref<12x32xf32, #tpu.memory_space<vmem>>, vector<12x32xf32>
    %cst = arith.constant dense<0.000000e+00> : vector<64x32xf32>
    %3 = tpu.matmul %1, %2, %cst {dimension_numbers = #tpu.dot_dimension_numbers<[1], [0], [0], [1], [0, 0, 1, 1], [], []>} : vector<64x12xf32>, vector<12x32xf32>, vector<64x32xf32> -> vector<64x32xf32>
    %c0_4 = arith.constant 0 : index
    %c0_5 = arith.constant 0 : index
    %4 = vector.load %arg3[%c0_4, %c0_5] : memref<1x32xf32, #tpu.memory_space<vmem>>, vector<1x32xf32>
    %5 = vector.broadcast %4 : vector<1x32xf32> to vector<64x32xf32>
    %6 = arith.addf %3, %5 : vector<64x32xf32>
    %c0_6 = arith.constant 0 : index
    %c0_7 = arith.constant 0 : index
    %c0_8 = arith.constant 0 : index
    %7 = vector.load %arg4[%c0_6, %c0_7, %c0_8] : memref<1x64x32xf32, #tpu.memory_space<vmem>>, vector<1x64x32xf32>
    %8 = vector.shape_cast %7 : vector<1x64x32xf32> to vector<64x32xf32>
    %9 = vector.shape_cast %6 : vector<64x32xf32> to vector<1x64x32xf32>
    tpu.vector_store %arg4[%c0_6, %c0_7, %c0_8], %9 {strides = array<i32>} : memref<1x64x32xf32, #tpu.memory_space<vmem>>, vector<1x64x32xf32>,
    return
  }
  func.func @transform_0(%arg0: i32) -> (i32, i32, i32) {
    %c0_i32 = arith.constant 0 : i32
    %c0_i32_0 = arith.constant 0 : i32
    %c0_i32_1 = arith.constant 0 : i32
    return %arg0, %c0_i32, %c0_i32_0 : i32, i32, i32
  }
  func.func @transform_1(%arg0: i32) -> (i32, i32) {
    %c0_i32 = arith.constant 0 : i32
    %c0_i32_0 = arith.constant 0 : i32
    %c0_i32_1 = arith.constant 0 : i32
    return %c0_i32, %c0_i32_0 : i32, i32
  }
  func.func @transform_2(%arg0: i32) -> (i32, i32) {
    %c0_i32 = arith.constant 0 : i32
    %c0_i32_0 = arith.constant 0 : i32
    %c0_i32_1 = arith.constant 0 : i32
    return %c0_i32, %c0_i32_0 : i32, i32
  }
  func.func @transform_3(%arg0: i32) -> (i32, i32, i32) {
    %c0_i32 = arith.constant 0 : i32
    %c0_i32_0 = arith.constant 0 : i32
    %c0_i32_1 = arith.constant 0 : i32
    return %arg0, %c0_i32, %c0_i32_0 : i32, i32, i32
  }
}

</mosaic_0001>

<llo_original>
// kernel: tpu_custom_call.1
$region0: #{tpu_custom_call.1}
  #allocation0 [shape = 'u32[]', space=smem, size = 0x4, offset = 0x4, fixed_abs, tag = 'smem constant byte address 0x4 - core index']
  #allocation1 [shape = 'u32[72,128]{1,0:T(1,128)}', space=vmem, size = 0x9000, scoped, tag = 'internal scratch']
  %s0 = inlined_call_operand.vmem [shape: f32[2,64,12], index: 0, kind: input, shape index: {}]
  %s1 = inlined_call_operand.vmem [shape: f32[12,32], index: 1, kind: input, shape index: {}]
  %s2 = inlined_call_operand.vmem [shape: f32[1,32], index: 2, kind: input, shape index: {}]
  %s3 = inlined_call_operand.vmem [shape: f32[2,64,32], index: 3, kind: output, shape index: {}]
  %s4 = sld [smem:[#allocation0]]
  $region45: #{tpu_custom_call.1} parent=0
    _
  %s6 = ssub.s32 1, %s4
  %s7 = scalar_select 0, %s6, %s4
  loop: start=0, step=1, limit=4
  $region2: #{tpu_custom_call.1} parent=0 // loop_pre_header
    _
  $region3: #{tpu_custom_call.1} parent=0 // loop_header
    %s9 = sphi 0, %s13
    %p10 = scmp.ge.s32.totalorder %s9, 4
    %s19 = sphi 0, %s21
    %s22 = sphi 0, %s19
    %s23 = sphi 0, %s22
    %s39 = sphi 0, %s23
    %s43 = sphi 0, %s43
    %s45 = sphi 0, %s43
    %s46 = sphi 0, %s45
    %s60 = sphi 0, %s46
    %s64 = sphi 0, %s64
    %s66 = sphi 0, %s64
    %s67 = sphi 0, %s66
    %s81 = sphi 0, %s67
    %s87 = sphi 0, %s89
    %s90 = sphi 0, %s87
    %s91 = sphi 0, %s90
    %s107 = sphi 0, %s91
  $region4: #{tpu_custom_call.1} parent=0 // loop_header_branch
    %12 = sbr.rel (%p10) target = $region8
  $region5: #{tpu_custom_call.1} parent=0 // loop_body
    %s14 = ssub.s32 %s9, 1
    %s15 = ssub.s32 %s9, 2
    %s16 = sadd.s32 %s9, 1
    %s17 = ssub.s32 %s9, %s16
    %p18 = scmp.eq.s32.totalorder %s17, 0
    %s20 = sadd.s32 %s19, 1
    %s21 = scalar_select %p18, %s19, %s20
    %p24 = pneg %p18
    %p25 = scmp.eq.s32.totalorder %s9, 1
    %p26 = por %p24, %p25
    %p27 = scmp.ne.s32.totalorder %s19, %s22
    %p28 = scmp.eq.s32.totalorder %s9, 0
    %p29 = por %p27, %p28
    %p30 = scmp.ne.s32.totalorder %s19, %s22
    %p31 = scmp.eq.s32.totalorder %s14, 1
    %p32 = por %p30, %p31
    %p33 = scmp.ne.s32.totalorder %s22, %s23
    %p34 = scmp.eq.s32.totalorder %s14, 0
    %p35 = por %p33, %p34
    %p36 = scmp.ne.s32.totalorder %s22, %s23
    %p37 = scmp.eq.s32.totalorder %s15, 1
    %p38 = por %p36, %p37
    %p40 = scmp.ne.s32.totalorder %s23, %s39
    %p41 = scmp.eq.s32.totalorder %s15, 0
    %p42 = por %p40, %p41
    %s44 = sadd.s32 %s43, 1
    %p47 = scmp.eq.s32.totalorder %s9, 1
    %p48 = scmp.ne.s32.totalorder %s43, %s45
    %p49 = scmp.eq.s32.totalorder %s9, 0
    %p50 = por %p48, %p49
    %p51 = scmp.ne.s32.totalorder %s43, %s45
    %p52 = scmp.eq.s32.totalorder %s14, 1
    %p53 = por %p51, %p52
    %p54 = scmp.ne.s32.totalorder %s45, %s46
    %p55 = scmp.eq.s32.totalorder %s14, 0
    %p56 = por %p54, %p55
    %p57 = scmp.ne.s32.totalorder %s45, %s46
    %p58 = scmp.eq.s32.totalorder %s15, 1
    %p59 = por %p57, %p58
    %p61 = scmp.ne.s32.totalorder %s46, %s60
    %p62 = scmp.eq.s32.totalorder %s15, 0
    %p63 = por %p61, %p62
    %s65 = sadd.s32 %s64, 1
    %p68 = scmp.eq.s32.totalorder %s9, 1
    %p69 = scmp.ne.s32.totalorder %s64, %s66
    %p70 = scmp.eq.s32.totalorder %s9, 0
    %p71 = por %p69, %p70
    %p72 = scmp.ne.s32.totalorder %s64, %s66
    %p73 = scmp.eq.s32.totalorder %s14, 1
    %p74 = por %p72, %p73
    %p75 = scmp.ne.s32.totalorder %s66, %s67
    %p76 = scmp.eq.s32.totalorder %s14, 0
    %p77 = por %p75, %p76
    %p78 = scmp.ne.s32.totalorder %s66, %s67
    %p79 = scmp.eq.s32.totalorder %s15, 1
    %p80 = por %p78, %p79
    %p82 = scmp.ne.s32.totalorder %s67, %s81
    %p83 = scmp.eq.s32.totalorder %s15, 0
    %p84 = por %p82, %p83
    %s85 = ssub.s32 %s9, %s16
    %p86 = scmp.eq.s32.totalorder %s85, 0
    %s88 = sadd.s32 %s87, 1
    %s89 = scalar_select %p86, %s87, %s88
    %p92 = pneg %p86
    %p93 = scmp.eq.s32.totalorder %s9, 1
    %p94 = por %p92, %p93
    %p95 = scmp.ne.s32.totalorder %s87, %s90
    %p96 = scmp.eq.s32.totalorder %s9, 0
    %p97 = por %p95, %p96
    %p98 = scmp.ne.s32.totalorder %s87, %s90
    %p99 = scmp.eq.s32.totalorder %s14, 1
    %p100 = por %p98, %p99
    %p101 = scmp.ne.s32.totalorder %s90, %s91
    %p102 = scmp.eq.s32.totalorder %s14, 0
    %p103 = por %p101, %p102
    %p104 = scmp.ne.s32.totalorder %s90, %s91
    %p105 = scmp.eq.s32.totalorder %s15, 1
    %p106 = por %p104, %p105
    %p108 = scmp.ne.s32.totalorder %s91, %s107
    %p109 = scmp.eq.s32.totalorder %s15, 0
    %p110 = por %p108, %p109
    %p111 = scmp.le.s32.totalorder 1, %s9
    %p112 = scmp.lt.s32.totalorder %s9, 3
    %p113 = pnand %p111, %p112
    %p114 = pneg %p113
    // Predicated region
    $region9: #{tpu_custom_call.1} parent=5 // pred_check
      _
    $region10: #{tpu_custom_call.1} parent=5 // pred_check_branch
      %116 = sbr.rel (%p113) target = $region12
    $region11: #{tpu_custom_call.1} parent=5 // pred_region
      %s117 = ssub.s32 %s9, 1
      // Predicated region
      $region13: #{tpu_custom_call.1} parent=11 // pred_check
        %p118 = pneg %p56
      $region14: #{tpu_custom_call.1} parent=11 // pred_check_branch
        %120 = sbr.rel (%p118) target = $region16
      $region15: #{tpu_custom_call.1} parent=11 // pred_region
        _
      $region16: #{tpu_custom_call.1} parent=11 // pred_fallthru
        _
      // Predicated region
      $region17: #{tpu_custom_call.1} parent=11 // pred_check
        %p121 = pneg %p77
      $region18: #{tpu_custom_call.1} parent=11 // pred_check_branch
        %123 = sbr.rel (%p121) target = $region20
      $region19: #{tpu_custom_call.1} parent=11 // pred_region
        _
      $region20: #{tpu_custom_call.1} parent=11 // pred_fallthru
        _
    $region12: #{tpu_custom_call.1} parent=5 // pred_fallthru
      _
    %p124 = scmp.lt.s32.totalorder %s9, 2
    // Predicated region
    $region21: #{tpu_custom_call.1} parent=5 // pred_check
      %p125 = pneg %p124
    $region22: #{tpu_custom_call.1} parent=5 // pred_check_branch
      %127 = sbr.rel (%p125) target = $region24
    $region23: #{tpu_custom_call.1} parent=5 // pred_region
      // Predicated region
      $region25: #{tpu_custom_call.1} parent=23 // pred_check
        %p128 = pneg %p29
      $region26: #{tpu_custom_call.1} parent=23 // pred_check_branch
        %130 = sbr.rel (%p128) target = $region28
      $region27: #{tpu_custom_call.1} parent=23 // pred_region
        %p131 = scmp.lt.s32.totalorder %s9, 1
        %s132 = scalar_select %p131, %s9, 1
        %s133 = smul.addr %s132, 8
        %s134 = smul.addr %s133, 8
        %s135 = scalar_lea.vmem %s0, %s134
      $region28: #{tpu_custom_call.1} parent=23 // pred_fallthru
        _
    $region24: #{tpu_custom_call.1} parent=5 // pred_fallthru
      _
    %p136 = scmp.le.s32.totalorder 1, %s9
    %p137 = scmp.lt.s32.totalorder %s9, 3
    %p138 = pnand %p136, %p137
    %p139 = pneg %p138
    // Predicated region
    $region29: #{tpu_custom_call.1} parent=5 // pred_check
      _
    $region30: #{tpu_custom_call.1} parent=5 // pred_check_branch
      %141 = sbr.rel (%p138) target = $region32
    $region31: #{tpu_custom_call.1} parent=5 // pred_region
      %s142 = ssub.s32 %s9, 1
      %p143 = scmp.lt.s32.totalorder %s14, 1
      %s144 = scalar_select %p143, %s14, 1
      %s145 = smul.addr %s144, 8
      %s146 = smul.addr %s145, 8
      %s147 = scalar_lea.vmem %s0, %s146
      %p148 = pneg %p35
      %p149 = pneg %p32
      %p150 = pneg %p56
      %p151 = pneg %p53
      %p152 = pneg %p77
      %p153 = pneg %p74
      %p154 = pneg %p103
      %p155 = pneg %p100
      %p156 = scmp.lt.s32.totalorder %s14, 1
      %s157 = scalar_select %p156, %s14, 1
      %s158 = smul.addr %s157, 8
      %s159 = smul.addr %s158, 8
      %s160 = scalar_lea.vmem %s3, %s159
      %p161 = scmp.lt.s32.totalorder %s14, 1
      %s162 = scalar_select %p161, %s14, 1
      %s163 = smul.addr %s162, 8
      %s164 = smul.addr %s163, 8
      %s165 = scalar_lea.vmem %s0, %s164
      %p166 = scmp.lt.s32.totalorder %s14, 1
      %s167 = scalar_select %p166, %s14, 1
      %s168 = smul.addr %s167, 8
      %s169 = smul.addr %s168, 8
      %s170 = scalar_lea.vmem %s3, %s169
      %v171 = vld [vmem:[%s165] sm:$0xff]
      %v172 = vld [vmem:[%s165 + $0x8] sm:$0xff]
      %v173 = vld [vmem:[%s165 + $0x10] sm:$0xff]
      %v174 = vld [vmem:[%s165 + $0x18] sm:$0xff]
      %v175 = vld [vmem:[%s165 + $0x20] sm:$0xff]
      %v176 = vld [vmem:[%s165 + $0x28] sm:$0xff]
      %v177 = vld [vmem:[%s165 + $0x30] sm:$0xff]
      %v178 = vld [vmem:[%s165 + $0x38] sm:$0xff]
      %v179 = vld [vmem:[%s1] sm:$0xff]
      %v180 = vld [vmem:[%s1 + $0x8] sm:$0xf]
      %v181 = vld [vmem:[%s2] sm:$0x1]
      %v183 = vperm.slane %v181, 0
      %vm185 = vcmask 97280
      %v187 = vsel %vm185, %v171, 0
      %v190 = vsel %vm185, %v172, 0
      %v193 = vsel %vm185, %v173, 0
      %v196 = vsel %vm185, %v174, 0
      %v199 = vsel %vm185, %v175, 0
      %v202 = vsel %vm185, %v176, 0
      %v205 = vsel %vm185, %v177, 0
      %v208 = vsel %vm185, %v178, 0
      %vm210 = vcmask 1043456
      %v212 = vsel %vm210, %v180, 0
      %214 = vmatpush.msra.mxu0 0.0
      %215 = vmatpush.msra.mxu0 0.0
      %216 = vmatpush.msra.mxu0 0.0
      %217 = vmatpush.msra.mxu0 0.0
      %218 = vmatpush.msra.mxu0 0.0
      %219 = vmatpush.msra.mxu0 0.0
      %220 = vmatpush.msra.mxu0 0.0
      %221 = vmatpush.msra.mxu0 0.0
      %222 = vmatpush.msra.mxu0 0.0
      %223 = vmatpush.msra.mxu0 0.0
      %224 = vmatpush.msra.mxu0 0.0
      %225 = vmatpush.msra.mxu0 0.0
      %226 = vmatpush.msra.mxu0 0.0
      %227 = vmatpush.msra.mxu0 0.0
      %228 = vmatpush.msra.mxu0 %v212
      %229 = vmatpush.msra.mxu0 %v179
      %230 = vmatmul.f32.gmra.mxu0 %v187
      %v231 = vpop.f32.mrf.mxu0
      %v232 = vadd.f32 %v183, %v231
      %233 = vmatmul.f32.gmra.mxu0 %v190
      %v234 = vpop.f32.mrf.mxu0
      %v235 = vadd.f32 %v183, %v234
      %236 = vmatmul.f32.gmra.mxu0 %v193
      %v237 = vpop.f32.mrf.mxu0
      %v238 = vadd.f32 %v183, %v237
      %239 = vmatmul.f32.gmra.mxu0 %v196
      %v240 = vpop.f32.mrf.mxu0
      %v241 = vadd.f32 %v183, %v240
      %242 = vmatmul.f32.gmra.mxu0 %v199
      %v243 = vpop.f32.mrf.mxu0
      %v244 = vadd.f32 %v183, %v243
      %245 = vmatmul.f32.gmra.mxu0 %v202
      %v246 = vpop.f32.mrf.mxu0
      %v247 = vadd.f32 %v183, %v246
      %248 = vmatmul.f32.gmra.mxu0 %v205
      %v249 = vpop.f32.mrf.mxu0
      %v250 = vadd.f32 %v183, %v249
      %251 = vmatmul.f32.gmra.mxu0 %v208
      %v252 = vpop.f32.mrf.mxu0
      %v253 = vadd.f32 %v183, %v252
      %254 = vdwg.mxu0
      %vm255 = vcmask 261120
      %256 = vst.msk [vmem:[%s170] sm:$0xff] %vm255, %v232
      %257 = vst.msk [vmem:[%s170 + $0x8] sm:$0xff] %vm255, %v235
      %258 = vst.msk [vmem:[%s170 + $0x10] sm:$0xff] %vm255, %v238
      %259 = vst.msk [vmem:[%s170 + $0x18] sm:$0xff] %vm255, %v241
      %260 = vst.msk [vmem:[%s170 + $0x20] sm:$0xff] %vm255, %v244
      %261 = vst.msk [vmem:[%s170 + $0x28] sm:$0xff] %vm255, %v247
      %262 = vst.msk [vmem:[%s170 + $0x30] sm:$0xff] %vm255, %v250
      %263 = vst.msk [vmem:[%s170 + $0x38] sm:$0xff] %vm255, %v253
      %p264 = scmp.lt.s32.totalorder %s14, 1
      %s265 = scalar_select %p264, %s14, 1
      %s266 = smul.addr %s265, 8
      %s267 = smul.addr %s266, 8
      %s268 = scalar_lea.vmem %s3, %s267
      // Predicated region
      $region33: #{tpu_custom_call.1} parent=31 // pred_check
        %p269 = pneg %p100
      $region34: #{tpu_custom_call.1} parent=31 // pred_check_branch
        %271 = sbr.rel (%p269) target = $region36
      $region35: #{tpu_custom_call.1} parent=31 // pred_region
        _
      $region36: #{tpu_custom_call.1} parent=31 // pred_fallthru
        _
    $region32: #{tpu_custom_call.1} parent=5 // pred_fallthru
      _
    %p272 = scmp.le.s32.totalorder 2, %s9
    // Predicated region
    $region37: #{tpu_custom_call.1} parent=5 // pred_check
      %p273 = pneg %p272
    $region38: #{tpu_custom_call.1} parent=5 // pred_check_branch
      %275 = sbr.rel (%p273) target = $region40
    $region39: #{tpu_custom_call.1} parent=5 // pred_region
      %s276 = ssub.s32 %s9, 2
      // Predicated region
      $region41: #{tpu_custom_call.1} parent=39 // pred_check
        %p277 = pneg %p106
      $region42: #{tpu_custom_call.1} parent=39 // pred_check_branch
        %279 = sbr.rel (%p277) target = $region44
      $region43: #{tpu_custom_call.1} parent=39 // pred_region
        %p280 = scmp.lt.s32.totalorder %s15, 1
        %s281 = scalar_select %p280, %s15, 1
        %s282 = smul.addr %s281, 8
        %s283 = smul.addr %s282, 8
        %s284 = scalar_lea.vmem %s3, %s283
      $region44: #{tpu_custom_call.1} parent=39 // pred_fallthru
        _
    $region40: #{tpu_custom_call.1} parent=5 // pred_fallthru
      _
  $region6: #{tpu_custom_call.1} parent=0 // loop_footer
    %s13 = sadd.s32 1, %s9
  $region7: #{tpu_custom_call.1} parent=0 // loop_footer_branch
    %8 = sbr.rel target = $region3
  $region8: #{tpu_custom_call.1} parent=0 // loop_exit
    _

</llo_original>
